<compile_context>
chip_gen: v6e
topology: v6e:2x2x1
jax: 0.10.0
libtpu: 0.0.40
codegen_flags: <defaults>
</compile_context>

<pallas_src>
import functools

import jax
import jax.numpy as jnp
from jax.experimental import pallas as pl
from jax.experimental.pallas import tpu as pltpu

LANES = 128
SUBLANES = 8
ROW_TILE = 8192                         # (8192, 128) f32 = 4 MiB per input per buffer
VMEM_LIMIT_BYTES = 48 * 1024 * 1024     # 16 MiB double-buffered I/O + in-kernel temps


def _tensorcores_per_chip():
    """Best-effort TensorCore count (2 on v7x, 1 on v5e/v6e); safe fallback 1."""
    try:
        info = pltpu.get_tpu_info()
    except Exception:
        return 1
    for name in ("num_cores", "core_count", "num_tensorcores",
                 "tensorcores_per_chip", "cores_per_chip"):
        val = getattr(info, name, None)
        if isinstance(val, int) and val > 0:
            return max(1, min(2, val))
    return 1


def _l1_kernel(x_ref, y_ref, o_ref, *, rows, tile_rows, steps, needs_mask,
               wide_acc):
    i = pl.program_id(1)

    @pl.when(i == 0)
    def _init():
        o_ref[...] = jnp.zeros_like(o_ref)

    diff = jnp.abs(x_ref[...].astype(jnp.float32) -
                   y_ref[...].astype(jnp.float32))

    if needs_mask:
        # Row-only mask: covers both the partial last block and any phantom
        # blocks created by the parallel split (all their rows are >= rows).
        gb = pl.program_id(0) * steps + i
        row_ids = jax.lax.broadcasted_iota(jnp.int32, diff.shape, 0)
        diff = jnp.where(gb * tile_rows + row_ids < rows, diff, 0.0)

    if wide_acc:
        # (tile_rows, 128) -> (tile_rows//8, 8, 128) is layout-preserving, so
        # the axis-0 reduction is pure vreg-wise VPU adds into the resident
        # (1, 8, 128) accumulator block.
        o_ref[...] += diff.reshape(-1, SUBLANES, LANES).sum(axis=0)[None]
    else:
        # Small odd-row tile (rows < row_tile and not a multiple of 8):
        # single sublane reduce into a (1, 1, 128) accumulator.
        o_ref[...] += jnp.sum(diff, axis=0, keepdims=True)[None]


def l1_loss(y_pt, y_gt, *, row_tile=ROW_TILE):
    """Pallas equivalent of nn.L1Loss() (reduction='mean')."""
    assert y_pt.shape == y_gt.shape, "L1Loss expects matching shapes"
    n_elems = int(y_pt.size)

    flat_pt = y_pt.reshape(-1)
    flat_gt = y_gt.reshape(-1)

    # Main slab: leading multiple-of-128 elements (no padding copy). The
    # <=127-element lane tail is reduced with plain jnp below.
    n_main = (n_elems // LANES) * LANES
    lane_tail = n_elems - n_main

    tail_sum = jnp.float32(0.0)
    if lane_tail:
        tail_sum = jnp.sum(
            jnp.abs(flat_pt[n_main:].astype(jnp.float32) -
                    flat_gt[n_main:].astype(jnp.float32)))

    if n_main == 0:
        # Tiny input (< 128 elements): nothing for the kernel to stream.
        return tail_sum / n_elems

    rows = n_main // LANES
    main_pt = (flat_pt if lane_tail == 0 else flat_pt[:n_main]).reshape(rows, LANES)
    main_gt = (flat_gt if lane_tail == 0 else flat_gt[:n_main]).reshape(rows, LANES)

    tile_rows = rows if rows < row_tile else row_tile
    num_blocks = -(-rows // tile_rows)
    num_slices = max(1, min(_tensorcores_per_chip(), num_blocks))
    steps = -(-num_blocks // num_slices)

    needs_mask = (num_slices * steps * tile_rows) != rows
    wide_acc = (tile_rows % SUBLANES) == 0
    acc_rows = SUBLANES if wide_acc else 1

    if num_slices * steps > num_blocks:
        def in_map(s, i):
            # Clamp phantom blocks (parallel-split remainder) onto the last
            # real block; their contribution is masked to zero in-kernel.
            return (jnp.minimum(s * steps + i, num_blocks - 1), 0)
    else:
        def in_map(s, i):
            return (s * steps + i, 0)

    kernel = functools.partial(
        _l1_kernel, rows=rows, tile_rows=tile_rows, steps=steps,
        needs_mask=needs_mask, wide_acc=wide_acc)

    bytes_accessed = n_main * (jnp.dtype(y_pt.dtype).itemsize +
                               jnp.dtype(y_gt.dtype).itemsize)

    partials = pl.pallas_call(
        kernel,
        out_shape=jax.ShapeDtypeStruct((num_slices, acc_rows, LANES),
                                       jnp.float32),
        grid_spec=pltpu.PrefetchScalarGridSpec(
            num_scalar_prefetch=0,
            grid=(num_slices, steps),
            in_specs=[
                pl.BlockSpec((tile_rows, LANES), in_map),
                pl.BlockSpec((tile_rows, LANES), in_map),
            ],
            out_specs=pl.BlockSpec((1, acc_rows, LANES), lambda s, i: (s, 0, 0)),
        ),
        compiler_params=pltpu.CompilerParams(
            dimension_semantics=("parallel", "arbitrary"),
            vmem_limit_bytes=VMEM_LIMIT_BYTES,
        ),
        cost_estimate=pl.CostEstimate(
            flops=3 * n_main,
            transcendentals=0,
            bytes_accessed=bytes_accessed),
    )(main_pt, main_gt)

    return (jnp.sum(partials) + tail_sum) / n_elems


def _check(y_pt, y_gt, **kw):
    loss = l1_loss(y_pt, y_gt, **kw)
    jax.block_until_ready(loss)
    ref = jnp.mean(jnp.abs(y_pt.astype(jnp.float32) - y_gt.astype(jnp.float32)))
    assert jnp.allclose(loss, ref, rtol=1e-5, atol=1e-6), (loss, ref)


if __name__ == "__main__":
    key = jax.random.PRNGKey(0)
    k1, k2, k3, k4 = jax.random.split(key, 4)

    # Primary case: typical NCHW restoration shapes.
    a = jax.random.normal(k1, (2, 4, 16, 16), dtype=jnp.float32)
    b = jax.random.normal(k2, (2, 4, 16, 16), dtype=jnp.float32)
    _check(a, b)

    # Odd total size (not a multiple of 128): exercises jnp lane tail +
    # odd-row single-block accumulator path.
    c = jax.random.normal(k3, (3, 5, 7, 11), dtype=jnp.float32)
    d = jax.random.normal(k4, (3, 5, 7, 11), dtype=jnp.float32)
    _check(c, d)

    # Small row_tile to exercise the multi-block / parallel-slice path.
    _check(a, b, row_tile=8)

    # Non-divisible multi-block path (partial block -> row mask).
    e = jax.random.normal(k1, (2, 4, 18, 16), dtype=jnp.float32)
    f = jax.random.normal(k2, (2, 4, 18, 16), dtype=jnp.float32)
    _check(e, f, row_tile=8)

    print("KERNEL_OK")
</pallas_src>

<mosaic_0001>
module attributes {stable_mosaic.version = 11 : i64} {
  func.func @_l1_kernel(%arg0: i32, %arg1: i32, %arg2: memref<16x128xf32, #tpu.memory_space<vmem>>, %arg3: memref<16x128xf32, #tpu.memory_space<vmem>>, %arg4: memref<1x8x128xf32, #tpu.memory_space<vmem>>) attributes {dimension_semantics = [#tpu.dimension_semantics<parallel>, #tpu.dimension_semantics<arbitrary>], iteration_bounds = array<i64: 1, 1>, scalar_prefetch = 0 : i64, scratch_operands = 0 : i64, tpu.core_type = #tpu.core_type<tc>, window_params = [{transform_indices = @transform_0, window_bounds = array<i64: 16, 128>}, {transform_indices = @transform_1, window_bounds = array<i64: 16, 128>}, {transform_indices = @transform_2, window_bounds = array<i64: 1, 8, 128>}]} {
    %c0_i32 = arith.constant 0 : i32
    %0 = arith.cmpi eq, %arg1, %c0_i32 : i32
    %1 = arith.extui %0 : i1 to i32
    %c0_i32_0 = arith.constant 0 : i32
    %2 = arith.cmpi ne, %1, %c0_i32_0 : i32
    scf.if %2 {
      %cst_10 = arith.constant 0.000000e+00 : f32
      %13 = vector.broadcast %cst_10 : f32 to vector<1x8x128xf32>
      %c0_11 = arith.constant 0 : index
      %c0_12 = arith.constant 0 : index
      %c0_13 = arith.constant 0 : index
      %14 = vector.load %arg4[%c0_11, %c0_12, %c0_13] : memref<1x8x128xf32, #tpu.memory_space<vmem>>, vector<1x8x128xf32>
      tpu.vector_store %arg4[%c0_11, %c0_12, %c0_13], %13 {strides = array<i32>} : memref<1x8x128xf32, #tpu.memory_space<vmem>>, vector<1x8x128xf32>,
    } else {
    }
    %c0 = arith.constant 0 : index
    %c0_1 = arith.constant 0 : index
    %3 = vector.load %arg2[%c0, %c0_1] : memref<16x128xf32, #tpu.memory_space<vmem>>, vector<16x128xf32>
    %c0_2 = arith.constant 0 : index
    %c0_3 = arith.constant 0 : index
    %4 = vector.load %arg3[%c0_2, %c0_3] : memref<16x128xf32, #tpu.memory_space<vmem>>, vector<16x128xf32>
    %5 = arith.subf %3, %4 : vector<16x128xf32>
    %6 = math.absf %5 : vector<16x128xf32>
    %c0_4 = arith.constant 0 : index
    %c0_5 = arith.constant 0 : index
    %c0_6 = arith.constant 0 : index
    %7 = vector.load %arg4[%c0_4, %c0_5, %c0_6] : memref<1x8x128xf32, #tpu.memory_space<vmem>>, vector<1x8x128xf32>
    %8 = vector.shape_cast %6 : vector<16x128xf32> to vector<2x8x128xf32>
    %cst = arith.constant dense<0.000000e+00> : vector<8x128xf32>
    %9 = vector.multi_reduction <add>, %8, %cst [0] : vector<2x8x128xf32> to vector<8x128xf32>
    %10 = vector.shape_cast %9 : vector<8x128xf32> to vector<1x8x128xf32>
    %11 = arith.addf %7, %10 : vector<1x8x128xf32>
    %c0_7 = arith.constant 0 : index
    %c0_8 = arith.constant 0 : index
    %c0_9 = arith.constant 0 : index
    %12 = vector.load %arg4[%c0_7, %c0_8, %c0_9] : memref<1x8x128xf32, #tpu.memory_space<vmem>>, vector<1x8x128xf32>
    tpu.vector_store %arg4[%c0_7, %c0_8, %c0_9], %11 {strides = array<i32>} : memref<1x8x128xf32, #tpu.memory_space<vmem>>, vector<1x8x128xf32>,
    return
  }
  func.func @transform_0(%arg0: i32, %arg1: i32) -> (i32, i32) {
    %c1_i32 = arith.constant 1 : i32
    %0 = arith.muli %arg0, %c1_i32 : i32
    %1 = arith.addi %0, %arg1 : i32
    %c0_i32 = arith.constant 0 : i32
    %c0_i32_0 = arith.constant 0 : i32
    return %1, %c0_i32 : i32, i32
  }
  func.func @transform_1(%arg0: i32, %arg1: i32) -> (i32, i32) {
    %c1_i32 = arith.constant 1 : i32
    %0 = arith.muli %arg0, %c1_i32 : i32
    %1 = arith.addi %0, %arg1 : i32
    %c0_i32 = arith.constant 0 : i32
    %c0_i32_0 = arith.constant 0 : i32
    return %1, %c0_i32 : i32, i32
  }
  func.func @transform_2(%arg0: i32, %arg1: i32) -> (i32, i32, i32) {
    %c0_i32 = arith.constant 0 : i32
    %c0_i32_0 = arith.constant 0 : i32
    %c0_i32_1 = arith.constant 0 : i32
    return %arg0, %c0_i32, %c0_i32_0 : i32, i32, i32
  }
}

</mosaic_0001>

<llo_original>
// kernel: tpu_custom_call.1
$region0: #{tpu_custom_call.1}
  #allocation0 [shape = 'u32[]', space=smem, size = 0x4, offset = 0x4, fixed_abs, tag = 'smem constant byte address 0x4 - core index']
  #allocation1 [shape = 'u32[144,128]{1,0:T(1,128)}', space=vmem, size = 0x12000, scoped, tag = 'internal scratch']
  %s0 = inlined_call_operand.hbm [shape: f32[16,128], index: 0, kind: input, shape index: {}]
  %s1 = inlined_call_operand.hbm [shape: f32[16,128], index: 1, kind: input, shape index: {}]
  %s2 = inlined_call_operand.hbm [shape: f32[1,8,128], index: 2, kind: output, shape index: {}]
  %s3 = sld [smem:[#allocation0]]
  $region30: #{tpu_custom_call.1} parent=0
    _
  %s5 = ssub.s32 1, %s3
  %s6 = scalar_select 0, %s5, %s3
  $region1: #{tpu_custom_call.1} parent=0
    #allocation2 [shape = 'u8[8192]{0}', space=vmem, size = 0x2000, scoped, tag = 'input window, operand 0, single buffered']
    #allocation3 [shape = 's32[1]{0}', space=sflag, size = 0x4, scoped, tag = 'scoped memory for tpu_custom_call.1']
    #allocation4 [shape = 's32[1]{0}', space=sflag, size = 0x4, scoped, tag = 'scoped memory for tpu_custom_call.1']
    #allocation5 [shape = 'u8[8192]{0}', space=vmem, size = 0x2000, scoped, tag = 'input window, operand 1, single buffered']
    #allocation6 [shape = 's32[1]{0}', space=sflag, size = 0x4, scoped, tag = 'scoped memory for tpu_custom_call.1']
    #allocation7 [shape = 'u8[4096]{0}', space=vmem, size = 0x1000, scoped, tag = 'output window, operand 0, single buffered']
    %7 = vsyncpa [#allocation3], 0
    %8 = vsyncpa [#allocation6], 0
    %9 = vsyncpa [#allocation4], 0
    // Predicated region
    $region2: #{tpu_custom_call.1} parent=1 // pred_check
      _
    $region3: #{tpu_custom_call.1} parent=1 // pred_check_branch
      %11 = sbr.rel (0) target = $region5
    $region4: #{tpu_custom_call.1} parent=1 // pred_region
      %s12 = sadd.s32 0, 0
      %s13 = smul.u32 2, %s12
      %s15 = ssub.s32 256, 256
      %16 = vsyncadd [#allocation3], %s15
      %s17 = smul.addr %s13, 128
      %s18 = scalar_lea.hbm %s0, %s17
      %s19 = sshll.u32 [#allocation2], 4
      %s20 = int_to_ptr.vmem [resolvable:$true] %s19
      %25 = dma.hbm_to_vmem [thread:$0]  %s18, 256, %s20, [#allocation3], 128, 128, 8
    $region5: #{tpu_custom_call.1} parent=1 // pred_fallthru
      _
    // Predicated region
    $region6: #{tpu_custom_call.1} parent=1 // pred_check
      _
    $region7: #{tpu_custom_call.1} parent=1 // pred_check_branch
      %27 = sbr.rel (0) target = $region9
    $region8: #{tpu_custom_call.1} parent=1 // pred_region
      %s28 = sadd.s32 0, 0
      %s29 = smul.u32 2, %s28
      %s31 = ssub.s32 256, 256
      %32 = vsyncadd [#allocation6], %s31
      %s33 = smul.addr %s29, 128
      %s34 = scalar_lea.hbm %s1, %s33
      %s35 = sshll.u32 [#allocation5], 4
      %s36 = int_to_ptr.vmem [resolvable:$true] %s35
      %41 = dma.hbm_to_vmem [thread:$0]  %s34, 256, %s36, [#allocation6], 128, 128, 8
    $region9: #{tpu_custom_call.1} parent=1 // pred_fallthru
      _
    // Predicated region
    $region10: #{tpu_custom_call.1} parent=1 // pred_check
      _
    $region11: #{tpu_custom_call.1} parent=1 // pred_check_branch
      %43 = sbr.rel (0) target = $region13
    $region12: #{tpu_custom_call.1} parent=1 // pred_region
      %44 = dma.done [#allocation3], 256
    $region13: #{tpu_custom_call.1} parent=1 // pred_fallthru
      _
    // Predicated region
    $region14: #{tpu_custom_call.1} parent=1 // pred_check
      _
    $region15: #{tpu_custom_call.1} parent=1 // pred_check_branch
      %46 = sbr.rel (0) target = $region17
    $region16: #{tpu_custom_call.1} parent=1 // pred_region
      %47 = dma.done [#allocation6], 256
    $region17: #{tpu_custom_call.1} parent=1 // pred_fallthru
      _
    %s48 = sadd.s32 0, 0
    %s49 = smul.u32 2, %s48
    %s50 = sadd.s32 0, 0
    %s51 = smul.u32 2, %s50
    %p52 = scmp.eq.s32.totalorder 0, 0
    // Predicated region
    $region18: #{tpu_custom_call.1} parent=1 // pred_check
      %p53 = pneg %p52
    $region19: #{tpu_custom_call.1} parent=1 // pred_check_branch
      %55 = sbr.rel (%p53) target = $region21
    $region20: #{tpu_custom_call.1} parent=1 // pred_region
      %56 = vst [vmem:[#allocation7] sm:$0xff] 0.0
    $region21: #{tpu_custom_call.1} parent=1 // pred_fallthru
      _
    %v57 = vld [vmem:[#allocation2] sm:$0xff]
    %v58 = vld [vmem:[#allocation2 + $0x8] sm:$0xff]
    %v59 = vld [vmem:[#allocation5] sm:$0xff]
    %v60 = vld [vmem:[#allocation5 + $0x8] sm:$0xff]
    %v61 = vsub.f32 %v57, %v59
    %v62 = vsub.f32 %v58, %v60
    %v63 = vand.u32 2147483647, %v61
    %v64 = vand.u32 2147483647, %v62
    %v65 = vld [vmem:[#allocation7] sm:$0xff]
    %v66 = vadd.f32 %v63, %v64
    %v67 = vadd.f32 %v65, %v66
    %68 = vst [vmem:[#allocation7] sm:$0xff] %v67
    // Predicated region
    $region22: #{tpu_custom_call.1} parent=1 // pred_check
      _
    $region23: #{tpu_custom_call.1} parent=1 // pred_check_branch
      %70 = sbr.rel (0) target = $region25
    $region24: #{tpu_custom_call.1} parent=1 // pred_region
      %s72 = ssub.s32 128, 128
      %73 = vsyncadd [#allocation4], %s72
      %s75 = sshll.u32 [#allocation7], 4
      %s76 = int_to_ptr.vmem [resolvable:$true] %s75
      %78 = dma.vmem_to_hbm [thread:$0]  %s76, 128, %s2, [#allocation4]
    $region25: #{tpu_custom_call.1} parent=1 // pred_fallthru
      _
    // Predicated region
    $region26: #{tpu_custom_call.1} parent=1 // pred_check
      _
    $region27: #{tpu_custom_call.1} parent=1 // pred_check_branch
      %80 = sbr.rel (0) target = $region29
    $region28: #{tpu_custom_call.1} parent=1 // pred_region
      %81 = dma.done [#allocation4], 128
    $region29: #{tpu_custom_call.1} parent=1 // pred_fallthru
      _
    %82 = vsyncpa [#allocation3], 1
    %83 = vsyncpa [#allocation6], 1
    %84 = vsyncpa [#allocation4], 1

</llo_original>
